<compile_context>
chip_gen: v6e
topology: v6e:2x2x1
jax: 0.10.0
libtpu: 0.0.40
codegen_flags: <defaults>
</compile_context>

<pallas_src>
import math
from functools import partial

import jax
import jax.numpy as jnp
from jax.experimental import pallas as pl
from jax.experimental.pallas import tpu as pltpu

LANE = 128
SUBLANE = 8
MAX_TILE_B = 2048            # VMEM-safe cap per batch tile (still < a few MiB of activations)
COMPUTE_DTYPE = jnp.bfloat16  # MXU-native input type on v5e/v6e/v7x


def _round_up(n, m):
    return (n + m - 1) // m * m


_NUM_TC = None


def _num_tensorcores():
    """Best-effort detection of TensorCores per chip (v7x = 2, v5e/v6e = 1)."""
    global _NUM_TC
    if _NUM_TC is None:
        n = 1
        try:
            kind = jax.devices()[0].device_kind.lower()
            if "v7" in kind or "7x" in kind:
                n = 2
        except Exception:
            n = 1
        _NUM_TC = n
    return _NUM_TC


def _pick_tiles(B):
    """Pick (tile_b, n_tiles): 1 tile on v5e/v6e, 2 parallel tiles on v7x, padding < 8 rows/tile."""
    cores = _num_tensorcores()
    n_tiles = max(1, math.ceil(B / MAX_TILE_B))
    if cores > 1 and B >= cores * SUBLANE:
        n_tiles = max(n_tiles, cores)
    tile_b = _round_up(math.ceil(B / n_tiles), SUBLANE)
    return tile_b, n_tiles


# ---------------------------------------------------------------------------
# Kernel
# ---------------------------------------------------------------------------
def dqn_kernel(x_ref, w1_ref, b1_ref, w2_ref, b2_ref, w3_ref, b3_ref, o_ref):
    # Layer 1: Linear + ReLU (bf16 inputs, f32 accumulate on MXU; bias/ReLU in f32 on VPU)
    h1 = jnp.dot(x_ref[...], w1_ref[...], preferred_element_type=jnp.float32)
    h1 = jnp.maximum(h1 + b1_ref[...], 0.0)
    # Layer 2: Linear + ReLU
    h2 = jnp.dot(h1.astype(w2_ref.dtype), w2_ref[...],
                 preferred_element_type=jnp.float32)
    h2 = jnp.maximum(h2 + b2_ref[...], 0.0)
    # Layer 3: Linear (Q-values, lane-dense padded to 128 output columns)
    q = jnp.dot(h2.astype(w3_ref.dtype), w3_ref[...],
                preferred_element_type=jnp.float32)
    o_ref[...] = (q + b3_ref[...]).astype(o_ref.dtype)


def _forward_padded(x, w1, b1, w2, b2, w3, b3):
    """Runs the fused kernel; returns the padded (b_pad, n_pad) bf16 Q matrix."""
    B, in_dims = x.shape
    in_pad = w1.shape[0]   # lane-padded input width (multiple of 128)
    n_pad = w3.shape[1]    # lane-padded output width (multiple of 128)

    tile_b, n_tiles = _pick_tiles(B)
    b_pad = tile_b * n_tiles

    # cast + pad x (fuses with the pallas_call dispatch under jit)
    x_c = jnp.pad(x.astype(COMPUTE_DTYPE),
                  ((0, b_pad - B), (0, in_pad - in_dims)))

    def const_spec(a):
        # Full-array block, constant index_map -> resident in VMEM across all batch tiles.
        return pl.BlockSpec(a.shape, lambda i: (0,) * a.ndim)

    out = pl.pallas_call(
        dqn_kernel,
        out_shape=jax.ShapeDtypeStruct((b_pad, n_pad), jnp.bfloat16),
        grid=(n_tiles,),
        in_specs=[
            pl.BlockSpec((tile_b, in_pad), lambda i: (i, 0)),  # x batch tile
            const_spec(w1), const_spec(b1),
            const_spec(w2), const_spec(b2),
            const_spec(w3), const_spec(b3),
        ],
        out_specs=pl.BlockSpec((tile_b, n_pad), lambda i: (i, 0)),
        compiler_params=pltpu.CompilerParams(
            # Batch tiles are independent -> split across v7x's 2 TensorCores;
            # harmless when grid=(1,) on v5e/v6e.
            dimension_semantics=("parallel",),
        ),
    )(x_c, w1, b1, w2, b2, w3, b3)
    return out


@partial(jax.jit, static_argnames=("n_actions",))
def _forward_jit(x, w1, b1, w2, b2, w3, b3, *, n_actions):
    q = _forward_padded(x, w1, b1, w2, b2, w3, b3)
    return q[: x.shape[0], :n_actions].astype(jnp.float32)


@partial(jax.jit, static_argnames=("n_actions",))
def _act_jit(x, w1, b1, w2, b2, w3, b3, *, n_actions):
    q = _forward_padded(x, w1, b1, w2, b2, w3, b3)
    return jnp.argmax(q[: x.shape[0], :n_actions], axis=1)


# ---------------------------------------------------------------------------
# Public API
# ---------------------------------------------------------------------------
def prepare_params(params):
    """One-time device-side weight prep: bf16 cast + lane padding. Do NOT call per step."""
    w1, b1, w2, b2, w3, b3 = params
    in_dims = w1.shape[0]
    n_actions = w3.shape[1]
    in_pad = _round_up(max(in_dims, LANE), LANE)
    n_pad = _round_up(max(n_actions, LANE), LANE)

    w1p = jnp.pad(w1.astype(COMPUTE_DTYPE), ((0, in_pad - in_dims), (0, 0)))
    w2p = w2.astype(COMPUTE_DTYPE)
    w3p = jnp.pad(w3.astype(COMPUTE_DTYPE), ((0, 0), (0, n_pad - n_actions)))
    b1f = b1.astype(jnp.float32)
    b2f = b2.astype(jnp.float32)
    b3f = jnp.pad(b3.astype(jnp.float32), ((0, 0), (0, n_pad - n_actions)))

    return {
        "w1": w1p, "b1": b1f, "w2": w2p, "b2": b2f, "w3": w3p, "b3": b3f,
        "input_dims": in_dims, "n_actions": n_actions,
    }


def dqn_forward(x, prepared):
    """Fused 3-layer MLP forward. x: (B, input_dims) float32 -> (B, n_actions) float32."""
    return _forward_jit(x, prepared["w1"], prepared["b1"], prepared["w2"],
                        prepared["b2"], prepared["w3"], prepared["b3"],
                        n_actions=prepared["n_actions"])


def act(obs, prepared):
    """Greedy action for a single observation; argmax stays inside the jit, returns a device array."""
    obs = jnp.asarray(obs, jnp.float32)
    if obs.ndim == 1:
        obs = obs[None, :]
    actions = _act_jit(obs, prepared["w1"], prepared["b1"], prepared["w2"],
                       prepared["b2"], prepared["w3"], prepared["b3"],
                       n_actions=prepared["n_actions"])
    return actions[0]


# ---------------------------------------------------------------------------
# Param init + reference (same numerics as the kernel: bf16 weights, f32 accumulate)
# ---------------------------------------------------------------------------
def init_linear(key, fan_in, fan_out):
    """Deterministic init mimicking nn.Linear default: U(-1/sqrt(fan_in), +1/sqrt(fan_in))."""
    kw, kb = jax.random.split(key)
    bound = 1.0 / jnp.sqrt(jnp.float32(fan_in))
    # stored as (in, out) — transposed relative to PyTorch's (out, in)
    w = jax.random.uniform(kw, (fan_in, fan_out), jnp.float32, -bound, bound)
    b = jax.random.uniform(kb, (1, fan_out), jnp.float32, -bound, bound)
    return w, b


def make_dqn_params(key, input_dims, n_actions, fc1_dims=256, fc2_dims=256):
    k1, k2, k3 = jax.random.split(key, 3)
    w1, b1 = init_linear(k1, input_dims, fc1_dims)
    w2, b2 = init_linear(k2, fc1_dims, fc2_dims)
    w3, b3 = init_linear(k3, fc2_dims, n_actions)
    return (w1, b1, w2, b2, w3, b3)


def reference_forward(x, params):
    """Pure-JAX reference using the same bf16-weight / f32-accumulate numerics as the kernel."""
    w1, b1, w2, b2, w3, b3 = params
    c = COMPUTE_DTYPE
    h1 = jnp.maximum(
        jnp.dot(x.astype(c), w1.astype(c), preferred_element_type=jnp.float32) + b1, 0.0)
    h2 = jnp.maximum(
        jnp.dot(h1.astype(c), w2.astype(c), preferred_element_type=jnp.float32) + b2, 0.0)
    return jnp.dot(h2.astype(c), w3.astype(c), preferred_element_type=jnp.float32) + b3


if __name__ == "__main__":
    key = jax.random.PRNGKey(0)
    k_params, k_x, k_xb, k_xo = jax.random.split(key, 4)

    batch = 2
    input_dims = 16
    n_actions = 4

    params = make_dqn_params(k_params, input_dims, n_actions, fc1_dims=256, fc2_dims=256)
    prepared = prepare_params(params)   # one-time weight prep (bf16 cast + lane padding)

    # act()/inference-sized path (B=2 -> padded to 8 sublanes, single grid point)
    x = jax.random.normal(k_x, (batch, input_dims), jnp.float32)
    q = dqn_forward(x, prepared)
    jax.block_until_ready(q)
    q_ref = reference_forward(x, params)
    assert q.shape == (batch, n_actions)
    assert jnp.allclose(q, q_ref, atol=1e-2, rtol=1e-2), "mismatch vs reference (small batch)"

    # greedy action for a single observation — argmax fused inside the same jit
    action = act(x[0], prepared)
    jax.block_until_ready(action)
    assert 0 <= int(action) < n_actions   # int() only here in the test, not in the hot path

    # learn()-sized path (B=512): weights stay VMEM-resident; 1 tile on v5e/v6e, 2 on v7x
    xb = jax.random.normal(k_xb, (512, input_dims), jnp.float32)
    qb = dqn_forward(xb, prepared)
    jax.block_until_ready(qb)
    qb_ref = reference_forward(xb, params)
    assert qb.shape == (512, n_actions)
    assert jnp.allclose(qb, qb_ref, atol=1e-2, rtol=1e-2), "mismatch vs reference (batched)"

    # odd-sized replay batch (B=300): padding is bounded to <8 rows per tile (no 300 -> 512 blowup)
    xo = jax.random.normal(k_xo, (300, input_dims), jnp.float32)
    qo = dqn_forward(xo, prepared)
    jax.block_until_ready(qo)
    qo_ref = reference_forward(xo, params)
    assert qo.shape == (300, n_actions)
    assert jnp.allclose(qo, qo_ref, atol=1e-2, rtol=1e-2), "mismatch vs reference (B=300)"

    # TODO(synk): replay buffer / epsilon-greedy exploration / optimizer step are host-side RL
    # machinery, not part of the forward pass, and are intentionally not ported.

    print("KERNEL_OK")
</pallas_src>

<mosaic_0001>
module attributes {stable_mosaic.version = 11 : i64} {
  func.func @dqn_kernel(%arg0: i32, %arg1: memref<8x128xbf16, #tpu.memory_space<vmem>>, %arg2: memref<128x256xbf16, #tpu.memory_space<vmem>>, %arg3: memref<1x256xf32, #tpu.memory_space<vmem>>, %arg4: memref<256x256xbf16, #tpu.memory_space<vmem>>, %arg5: memref<1x256xf32, #tpu.memory_space<vmem>>, %arg6: memref<256x128xbf16, #tpu.memory_space<vmem>>, %arg7: memref<1x128xf32, #tpu.memory_space<vmem>>, %arg8: memref<8x128xbf16, #tpu.memory_space<vmem>>) attributes {dimension_semantics = [#tpu.dimension_semantics<parallel>], iteration_bounds = array<i64: 1>, scalar_prefetch = 0 : i64, scratch_operands = 0 : i64, tpu.core_type = #tpu.core_type<tc>, window_params = [{transform_indices = @transform_0, window_bounds = array<i64: 8, 128>}, {pipeline_mode = #tpu.pipeline_mode<synchronous>, transform_indices = @transform_1, window_bounds = array<i64: 128, 256>}, {pipeline_mode = #tpu.pipeline_mode<synchronous>, transform_indices = @transform_2, window_bounds = array<i64: 1, 256>}, {pipeline_mode = #tpu.pipeline_mode<synchronous>, transform_indices = @transform_3, window_bounds = array<i64: 256, 256>}, {pipeline_mode = #tpu.pipeline_mode<synchronous>, transform_indices = @transform_4, window_bounds = array<i64: 1, 256>}, {pipeline_mode = #tpu.pipeline_mode<synchronous>, transform_indices = @transform_5, window_bounds = array<i64: 256, 128>}, {pipeline_mode = #tpu.pipeline_mode<synchronous>, transform_indices = @transform_6, window_bounds = array<i64: 1, 128>}, {transform_indices = @transform_7, window_bounds = array<i64: 8, 128>}]} {
    %c0 = arith.constant 0 : index
    %c0_0 = arith.constant 0 : index
    %0 = vector.load %arg1[%c0, %c0_0] : memref<8x128xbf16, #tpu.memory_space<vmem>>, vector<8x128xbf16>
    %c0_1 = arith.constant 0 : index
    %c0_2 = arith.constant 0 : index
    %1 = vector.load %arg2[%c0_1, %c0_2] : memref<128x256xbf16, #tpu.memory_space<vmem>>, vector<128x256xbf16>
    %cst = arith.constant dense<0.000000e+00> : vector<8x256xf32>
    %2 = tpu.matmul %0, %1, %cst {dimension_numbers = #tpu.dot_dimension_numbers<[1], [0], [0], [1], [0, 0, 1, 1], [], []>} : vector<8x128xbf16>, vector<128x256xbf16>, vector<8x256xf32> -> vector<8x256xf32>
    %c0_3 = arith.constant 0 : index
    %c0_4 = arith.constant 0 : index
    %3 = vector.load %arg3[%c0_3, %c0_4] : memref<1x256xf32, #tpu.memory_space<vmem>>, vector<1x256xf32>
    %4 = vector.broadcast %3 : vector<1x256xf32> to vector<8x256xf32>
    %5 = arith.addf %2, %4 : vector<8x256xf32>
    %cst_5 = arith.constant 0.000000e+00 : f32
    %6 = vector.broadcast %cst_5 : f32 to vector<8x256xf32>
    %7 = arith.maximumf %5, %6 : vector<8x256xf32>
    %8 = arith.truncf %7 : vector<8x256xf32> to vector<8x256xbf16>
    %c0_6 = arith.constant 0 : index
    %c0_7 = arith.constant 0 : index
    %9 = vector.load %arg4[%c0_6, %c0_7] : memref<256x256xbf16, #tpu.memory_space<vmem>>, vector<256x256xbf16>
    %cst_8 = arith.constant dense<0.000000e+00> : vector<8x256xf32>
    %10 = tpu.matmul %8, %9, %cst_8 {dimension_numbers = #tpu.dot_dimension_numbers<[1], [0], [0], [1], [0, 0, 1, 1], [], []>} : vector<8x256xbf16>, vector<256x256xbf16>, vector<8x256xf32> -> vector<8x256xf32>
    %c0_9 = arith.constant 0 : index
    %c0_10 = arith.constant 0 : index
    %11 = vector.load %arg5[%c0_9, %c0_10] : memref<1x256xf32, #tpu.memory_space<vmem>>, vector<1x256xf32>
    %12 = vector.broadcast %11 : vector<1x256xf32> to vector<8x256xf32>
    %13 = arith.addf %10, %12 : vector<8x256xf32>
    %cst_11 = arith.constant 0.000000e+00 : f32
    %14 = vector.broadcast %cst_11 : f32 to vector<8x256xf32>
    %15 = arith.maximumf %13, %14 : vector<8x256xf32>
    %16 = arith.truncf %15 : vector<8x256xf32> to vector<8x256xbf16>
    %c0_12 = arith.constant 0 : index
    %c0_13 = arith.constant 0 : index
    %17 = vector.load %arg6[%c0_12, %c0_13] : memref<256x128xbf16, #tpu.memory_space<vmem>>, vector<256x128xbf16>
    %cst_14 = arith.constant dense<0.000000e+00> : vector<8x128xf32>
    %18 = tpu.matmul %16, %17, %cst_14 {dimension_numbers = #tpu.dot_dimension_numbers<[1], [0], [0], [1], [0, 0, 1, 1], [], []>} : vector<8x256xbf16>, vector<256x128xbf16>, vector<8x128xf32> -> vector<8x128xf32>
    %c0_15 = arith.constant 0 : index
    %c0_16 = arith.constant 0 : index
    %19 = vector.load %arg7[%c0_15, %c0_16] : memref<1x128xf32, #tpu.memory_space<vmem>>, vector<1x128xf32>
    %20 = vector.broadcast %19 : vector<1x128xf32> to vector<8x128xf32>
    %21 = arith.addf %18, %20 : vector<8x128xf32>
    %22 = arith.truncf %21 : vector<8x128xf32> to vector<8x128xbf16>
    %c0_17 = arith.constant 0 : index
    %c0_18 = arith.constant 0 : index
    %23 = vector.load %arg8[%c0_17, %c0_18] : memref<8x128xbf16, #tpu.memory_space<vmem>>, vector<8x128xbf16>
    tpu.vector_store %arg8[%c0_17, %c0_18], %22 {strides = array<i32>} : memref<8x128xbf16, #tpu.memory_space<vmem>>, vector<8x128xbf16>,
    return
  }
  func.func @transform_0(%arg0: i32) -> (i32, i32) {
    %c0_i32 = arith.constant 0 : i32
    %c0_i32_0 = arith.constant 0 : i32
    return %arg0, %c0_i32 : i32, i32
  }
  func.func @transform_1(%arg0: i32) -> (i32, i32) {
    %c0_i32 = arith.constant 0 : i32
    %c0_i32_0 = arith.constant 0 : i32
    %c0_i32_1 = arith.constant 0 : i32
    return %c0_i32, %c0_i32_0 : i32, i32
  }
  func.func @transform_2(%arg0: i32) -> (i32, i32) {
    %c0_i32 = arith.constant 0 : i32
    %c0_i32_0 = arith.constant 0 : i32
    %c0_i32_1 = arith.constant 0 : i32
    return %c0_i32, %c0_i32_0 : i32, i32
  }
  func.func @transform_3(%arg0: i32) -> (i32, i32) {
    %c0_i32 = arith.constant 0 : i32
    %c0_i32_0 = arith.constant 0 : i32
    %c0_i32_1 = arith.constant 0 : i32
    return %c0_i32, %c0_i32_0 : i32, i32
  }
  func.func @transform_4(%arg0: i32) -> (i32, i32) {
    %c0_i32 = arith.constant 0 : i32
    %c0_i32_0 = arith.constant 0 : i32
    %c0_i32_1 = arith.constant 0 : i32
    return %c0_i32, %c0_i32_0 : i32, i32
  }
  func.func @transform_5(%arg0: i32) -> (i32, i32) {
    %c0_i32 = arith.constant 0 : i32
    %c0_i32_0 = arith.constant 0 : i32
    %c0_i32_1 = arith.constant 0 : i32
    return %c0_i32, %c0_i32_0 : i32, i32
  }
  func.func @transform_6(%arg0: i32) -> (i32, i32) {
    %c0_i32 = arith.constant 0 : i32
    %c0_i32_0 = arith.constant 0 : i32
    %c0_i32_1 = arith.constant 0 : i32
    return %c0_i32, %c0_i32_0 : i32, i32
  }
  func.func @transform_7(%arg0: i32) -> (i32, i32) {
    %c0_i32 = arith.constant 0 : i32
    %c0_i32_0 = arith.constant 0 : i32
    return %arg0, %c0_i32 : i32, i32
  }
}

</mosaic_0001>

<llo_original>
// kernel: _forward_jit.1
$region0: #{_forward_jit.1}
  #allocation0 [shape = 'u32[]', space=smem, size = 0x4, offset = 0x4, fixed_abs, tag = 'smem constant byte address 0x4 - core index']
  #allocation1 [shape = 'u32[144,128]{1,0:T(1,128)}', space=vmem, size = 0x12000, scoped, tag = 'internal scratch']
  %s0 = inlined_call_operand.vmem [shape: bf16[8,128], index: 0, kind: input, shape index: {}]
  %s1 = inlined_call_operand.hbm [shape: bf16[128,256], index: 1, kind: input, shape index: {}]
  %s2 = inlined_call_operand.vmem [shape: f32[1,256], index: 2, kind: input, shape index: {}]
  %s3 = inlined_call_operand.hbm [shape: bf16[256,256], index: 3, kind: input, shape index: {}]
  %s4 = inlined_call_operand.vmem [shape: f32[1,256], index: 4, kind: input, shape index: {}]
  %s5 = inlined_call_operand.hbm [shape: bf16[256,128], index: 5, kind: input, shape index: {}]
  %s6 = inlined_call_operand.vmem [shape: f32[1,128], index: 6, kind: input, shape index: {}]
  %s7 = inlined_call_operand.vmem [shape: bf16[8,128], index: 7, kind: output, shape index: {}]
  %s8 = sld [smem:[#allocation0]]
  $region50: #{_forward_jit.1} parent=0
    _
  %s10 = ssub.s32 1, %s8
  %s11 = scalar_select 0, %s10, %s8
  $region1: #{_forward_jit.1} parent=0
    #allocation2 [shape = 'u8[65536]{0}', space=vmem, size = 0x10000, scoped, tag = 'input window, operand 1, single buffered']
    #allocation3 [shape = 's32[1]{0}', space=sflag, size = 0x4, scoped, tag = 'scoped memory for _forward_jit.1']
    #allocation4 [shape = 'u8[131072]{0}', space=vmem, size = 0x20000, scoped, tag = 'input window, operand 3, single buffered']
    #allocation5 [shape = 's32[1]{0}', space=sflag, size = 0x4, scoped, tag = 'scoped memory for _forward_jit.1']
    #allocation6 [shape = 'u8[65536]{0}', space=vmem, size = 0x10000, scoped, tag = 'input window, operand 5, single buffered']
    %12 = vsyncpa [#allocation3], 0
    %13 = vsyncpa [#allocation5], 0
    // Predicated region
    $region2: #{_forward_jit.1} parent=1 // pred_check
      _
    $region3: #{_forward_jit.1} parent=1 // pred_check_branch
      %15 = sbr.rel (0) target = $region5
    $region4: #{_forward_jit.1} parent=1 // pred_region
      _
    $region5: #{_forward_jit.1} parent=1 // pred_fallthru
      _
    // Predicated region
    $region6: #{_forward_jit.1} parent=1 // pred_check
      _
    $region7: #{_forward_jit.1} parent=1 // pred_check_branch
      %17 = sbr.rel (0) target = $region9
    $region8: #{_forward_jit.1} parent=1 // pred_region
      %s19 = ssub.s32 2048, 2048
      %20 = vsyncadd [#allocation3], %s19
      %s21 = sshll.u32 [#allocation2], 4
      %s22 = int_to_ptr.vmem [resolvable:$true] %s21
      %27 = dma.hbm_to_vmem [thread:$0]  %s1, 2048, %s22, [#allocation3], 128, 128, 8
    $region9: #{_forward_jit.1} parent=1 // pred_fallthru
      _
    // Predicated region
    $region10: #{_forward_jit.1} parent=1 // pred_check
      _
    $region11: #{_forward_jit.1} parent=1 // pred_check_branch
      %29 = sbr.rel (0) target = $region13
    $region12: #{_forward_jit.1} parent=1 // pred_region
      _
    $region13: #{_forward_jit.1} parent=1 // pred_fallthru
      _
    // Predicated region
    $region14: #{_forward_jit.1} parent=1 // pred_check
      _
    $region15: #{_forward_jit.1} parent=1 // pred_check_branch
      %31 = sbr.rel (0) target = $region17
    $region16: #{_forward_jit.1} parent=1 // pred_region
      %s33 = ssub.s32 4096, 4096
      %34 = vsyncadd [#allocation5], %s33
      %s35 = sshll.u32 [#allocation4], 4
      %s36 = int_to_ptr.vmem [resolvable:$true] %s35
      %41 = dma.hbm_to_vmem [thread:$0]  %s3, 4096, %s36, [#allocation5], 128, 128, 8
    $region17: #{_forward_jit.1} parent=1 // pred_fallthru
      _
    // Predicated region
    $region18: #{_forward_jit.1} parent=1 // pred_check
      _
    $region19: #{_forward_jit.1} parent=1 // pred_check_branch
      %43 = sbr.rel (0) target = $region21
    $region20: #{_forward_jit.1} parent=1 // pred_region
      _
    $region21: #{_forward_jit.1} parent=1 // pred_fallthru
      _
    // Predicated region
    $region22: #{_forward_jit.1} parent=1 // pred_check
      _
    $region23: #{_forward_jit.1} parent=1 // pred_check_branch
      %45 = sbr.rel (0) target = $region25
    $region24: #{_forward_jit.1} parent=1 // pred_region
      %s47 = ssub.s32 2048, 2048
      %48 = vsyncadd [#allocation5], %s47
      %s49 = sshll.u32 [#allocation6], 4
      %s50 = int_to_ptr.vmem [resolvable:$true] %s49
      %55 = dma.hbm_to_vmem [thread:$0]  %s5, 2048, %s50, [#allocation5], 64, 64, 4
    $region25: #{_forward_jit.1} parent=1 // pred_fallthru
      _
    // Predicated region
    $region26: #{_forward_jit.1} parent=1 // pred_check
      _
    $region27: #{_forward_jit.1} parent=1 // pred_check_branch
      %57 = sbr.rel (0) target = $region29
    $region28: #{_forward_jit.1} parent=1 // pred_region
      _
    $region29: #{_forward_jit.1} parent=1 // pred_fallthru
      _
    // Predicated region
    $region30: #{_forward_jit.1} parent=1 // pred_check
      _
    $region31: #{_forward_jit.1} parent=1 // pred_check_branch
      %59 = sbr.rel (0) target = $region33
    $region32: #{_forward_jit.1} parent=1 // pred_region
      %60 = dma.done [#allocation3], 2048
    $region33: #{_forward_jit.1} parent=1 // pred_fallthru
      _
    // Predicated region
    $region34: #{_forward_jit.1} parent=1 // pred_check
      _
    $region35: #{_forward_jit.1} parent=1 // pred_check_branch
      %62 = sbr.rel (0) target = $region37
    $region36: #{_forward_jit.1} parent=1 // pred_region
      %63 = dma.done [#allocation5], 4096
    $region37: #{_forward_jit.1} parent=1 // pred_fallthru
      _
    // Predicated region
    $region38: #{_forward_jit.1} parent=1 // pred_check
      _
    $region39: #{_forward_jit.1} parent=1 // pred_check_branch
      %65 = sbr.rel (0) target = $region41
    $region40: #{_forward_jit.1} parent=1 // pred_region
      %66 = dma.done [#allocation5], 2048
    $region41: #{_forward_jit.1} parent=1 // pred_fallthru
      _
    %v68 = vld [vmem:[%s0] sm:$0xf]
    %v69 = vld [vmem:[#allocation2] sm:$0xff]
    %v70 = vld [vmem:[#allocation2 + $0x8] sm:$0xff]
    %v71 = vld [vmem:[#allocation2 + $0x10] sm:$0xff]
    %v72 = vld [vmem:[#allocation2 + $0x18] sm:$0xff]
    %v73 = vld [vmem:[#allocation2 + $0x20] sm:$0xff]
    %v74 = vld [vmem:[#allocation2 + $0x28] sm:$0xff]
    %v75 = vld [vmem:[#allocation2 + $0x30] sm:$0xff]
    %v76 = vld [vmem:[#allocation2 + $0x38] sm:$0xff]
    %v77 = vld [vmem:[#allocation2 + $0x40] sm:$0xff]
    %v78 = vld [vmem:[#allocation2 + $0x48] sm:$0xff]
    %v79 = vld [vmem:[#allocation2 + $0x50] sm:$0xff]
    %v80 = vld [vmem:[#allocation2 + $0x58] sm:$0xff]
    %v81 = vld [vmem:[#allocation2 + $0x60] sm:$0xff]
    %v82 = vld [vmem:[#allocation2 + $0x68] sm:$0xff]
    %v83 = vld [vmem:[#allocation2 + $0x70] sm:$0xff]
    %v84 = vld [vmem:[#allocation2 + $0x78] sm:$0xff]
    %v85 = vld [vmem:[%s2] sm:$0x3]
    %v87 = vlaneseq
    %v88 = vshrl.u32 %v87, 7
    %v89 = vsub.s32 0, %v88
    %v90 = vrot.slane %v85, %v89
    %v91 = vlaneseq
    %v92 = vshrl.u32 %v91, 7
    %v93 = vsub.s32 1, %v92
    %v94 = vrot.slane %v85, %v93
    %v113 = vunpack.c.l.b16 %v69
    %v114 = vunpack.c.h.b16 %v69
    %v115 = vunpack.c.l.b16 %v70
    %v116 = vunpack.c.h.b16 %v70
    %v117 = vunpack.c.l.b16 %v71
    %v118 = vunpack.c.h.b16 %v71
    %v119 = vunpack.c.l.b16 %v72
    %v120 = vunpack.c.h.b16 %v72
    %v121 = vunpack.c.l.b16 %v73
    %v122 = vunpack.c.h.b16 %v73
    %v123 = vunpack.c.l.b16 %v74
    %v124 = vunpack.c.h.b16 %v74
    %v125 = vunpack.c.l.b16 %v75
    %v126 = vunpack.c.h.b16 %v75
    %v127 = vunpack.c.l.b16 %v76
    %v128 = vunpack.c.h.b16 %v76
    %v129 = vunpack.c.l.b16 %v77
    %v130 = vunpack.c.h.b16 %v77
    %v131 = vunpack.c.l.b16 %v78
    %v132 = vunpack.c.h.b16 %v78
    %v133 = vunpack.c.l.b16 %v79
    %v134 = vunpack.c.h.b16 %v79
    %v135 = vunpack.c.l.b16 %v80
    %v136 = vunpack.c.h.b16 %v80
    %v137 = vunpack.c.l.b16 %v81
    %v138 = vunpack.c.h.b16 %v81
    %v139 = vunpack.c.l.b16 %v82
    %v140 = vunpack.c.h.b16 %v82
    %v141 = vunpack.c.l.b16 %v83
    %v142 = vunpack.c.h.b16 %v83
    %v143 = vunpack.c.l.b16 %v84
    %v144 = vunpack.c.h.b16 %v84
    %v145 = vpack.c.b16 %v115, %v113
    %v146 = vpack.c.b16 %v116, %v114
    %v147 = vpack.c.b16 %v119, %v117
    %v148 = vpack.c.b16 %v120, %v118
    %v149 = vpack.c.b16 %v123, %v121
    %v150 = vpack.c.b16 %v124, %v122
    %v151 = vpack.c.b16 %v127, %v125
    %v152 = vpack.c.b16 %v128, %v126
    %v153 = vpack.c.b16 %v131, %v129
    %v154 = vpack.c.b16 %v132, %v130
    %v155 = vpack.c.b16 %v135, %v133
    %v156 = vpack.c.b16 %v136, %v134
    %v157 = vpack.c.b16 %v139, %v137
    %v158 = vpack.c.b16 %v140, %v138
    %v159 = vpack.c.b16 %v143, %v141
    %v160 = vpack.c.b16 %v144, %v142
    %177 = vmatprep.subr.bf16.mxu0 %v160
    %178 = vmatpush1.bf16.msra.mxu0 %v159
    %179 = vmatprep.subr.bf16.mxu0 %v158
    %180 = vmatpush1.bf16.msra.mxu0 %v157
    %181 = vmatprep.subr.bf16.mxu0 %v156
    %182 = vmatpush1.bf16.msra.mxu0 %v155
    %183 = vmatprep.subr.bf16.mxu0 %v154
    %184 = vmatpush1.bf16.msra.mxu0 %v153
    %185 = vmatprep.subr.bf16.mxu0 %v152
    %186 = vmatpush1.bf16.msra.mxu0 %v151
    %187 = vmatprep.subr.bf16.mxu0 %v150
    %188 = vmatpush1.bf16.msra.mxu0 %v149
    %189 = vmatprep.subr.bf16.mxu0 %v148
    %190 = vmatpush1.bf16.msra.mxu0 %v147
    %191 = vmatprep.subr.bf16.mxu0 %v146
    %192 = vmatpush1.bf16.msra.mxu0 %v145
    %193 = vmatprep.subr.bf16.mxu0 0
    %194 = vmatpush2.bf16.msra.mxu0 0
    %195 = vmatprep.subr.bf16.mxu0 0
    %196 = vmatpush2.bf16.msra.mxu0 0
    %197 = vmatprep.subr.bf16.mxu0 0
    %198 = vmatpush2.bf16.msra.mxu0 0
    %199 = vmatprep.subr.bf16.mxu0 0
    %200 = vmatpush2.bf16.msra.mxu0 0
    %201 = vmatprep.subr.bf16.mxu0 0
    %202 = vmatpush2.bf16.msra.mxu0 0
    %203 = vmatprep.subr.bf16.mxu0 0
    %204 = vmatpush2.bf16.msra.mxu0 0
    %205 = vmatprep.subr.bf16.mxu0 0
    %206 = vmatpush2.bf16.msra.mxu0 0
    %207 = vmatprep.subr.bf16.mxu0 0
    %208 = vmatpush2.bf16.msra.mxu0 0
    %209 = vmatprep.mubr.bf16.mxu0 0
    %210 = vmatmul.mubr.bf16.gmra.mxu0 %v68
    %v211 = vpop.f32.mrf.mxu0
    %v212 = vadd.f32 %v90, %v211
    %v213 = vpop.f32.mrf.mxu0
    %v214 = vadd.f32 %v94, %v213
    %v215 = vpop.f32.mrf.mxu0
    %v216 = vpop.f32.mrf.mxu0
    %217 = vdwg.mxu0
    %v218 = vmax.f32 %v212, 0.0
    %v219 = vmax.f32 %v214, 0.0
    %v220 = vpack.c.bf16 %v218, %v218
    %v221 = vpack.c.bf16 %v219, %v219
    %v222 = vld [vmem:[#allocation4] sm:$0xff]
    %v223 = vld [vmem:[#allocation4 + $0x8] sm:$0xff]
    %v224 = vld [vmem:[#allocation4 + $0x10] sm:$0xff]
    %v225 = vld [vmem:[#allocation4 + $0x18] sm:$0xff]
    %v226 = vld [vmem:[#allocation4 + $0x20] sm:$0xff]
    %v227 = vld [vmem:[#allocation4 + $0x28] sm:$0xff]
    %v228 = vld [vmem:[#allocation4 + $0x30] sm:$0xff]
    %v229 = vld [vmem:[#allocation4 + $0x38] sm:$0xff]
    %v230 = vld [vmem:[#allocation4 + $0x40] sm:$0xff]
    %v231 = vld [vmem:[#allocation4 + $0x48] sm:$0xff]
    %v232 = vld [vmem:[#allocation4 + $0x50] sm:$0xff]
    %v233 = vld [vmem:[#allocation4 + $0x58] sm:$0xff]
    %v234 = vld [vmem:[#allocation4 + $0x60] sm:$0xff]
    %v235 = vld [vmem:[#allocation4 + $0x68] sm:$0xff]
    %v236 = vld [vmem:[#allocation4 + $0x70] sm:$0xff]
    %v237 = vld [vmem:[#allocation4 + $0x78] sm:$0xff]
    %v238 = vld [vmem:[#allocation4 + $0x80] sm:$0xff]
    %v239 = vld [vmem:[#allocation4 + $0x88] sm:$0xff]
    %v240 = vld [vmem:[#allocation4 + $0x90] sm:$0xff]
    %v241 = vld [vmem:[#allocation4 + $0x98] sm:$0xff]
    %v242 = vld [vmem:[#allocation4 + $0xa0] sm:$0xff]
    %v243 = vld [vmem:[#allocation4 + $0xa8] sm:$0xff]
    %v244 = vld [vmem:[#allocation4 + $0xb0] sm:$0xff]
    %v245 = vld [vmem:[#allocation4 + $0xb8] sm:$0xff]
    %v246 = vld [vmem:[#allocation4 + $0xc0] sm:$0xff]
    %v247 = vld [vmem:[#allocation4 + $0xc8] sm:$0xff]
    %v248 = vld [vmem:[#allocation4 + $0xd0] sm:$0xff]
    %v249 = vld [vmem:[#allocation4 + $0xd8] sm:$0xff]
    %v250 = vld [vmem:[#allocation4 + $0xe0] sm:$0xff]
    %v251 = vld [vmem:[#allocation4 + $0xe8] sm:$0xff]
    %v252 = vld [vmem:[#allocation4 + $0xf0] sm:$0xff]
    %v253 = vld [vmem:[#allocation4 + $0xf8] sm:$0xff]
    %v254 = vld [vmem:[%s4] sm:$0x3]
    %v256 = vlaneseq
    %v257 = vshrl.u32 %v256, 7
    %v258 = vsub.s32 0, %v257
    %v259 = vrot.slane %v254, %v258
    %v260 = vlaneseq
    %v261 = vshrl.u32 %v260, 7
    %v262 = vsub.s32 1, %v261
    %v263 = vrot.slane %v254, %v262
    %v298 = vunpack.c.l.b16 %v222
    %v299 = vunpack.c.h.b16 %v222
    %v300 = vunpack.c.l.b16 %v223
    %v301 = vunpack.c.h.b16 %v223
    %v302 = vunpack.c.l.b16 %v224
    %v303 = vunpack.c.h.b16 %v224
    %v304 = vunpack.c.l.b16 %v225
    %v305 = vunpack.c.h.b16 %v225
    %v306 = vunpack.c.l.b16 %v226
    %v307 = vunpack.c.h.b16 %v226
    %v308 = vunpack.c.l.b16 %v227
    %v309 = vunpack.c.h.b16 %v227
    %v310 = vunpack.c.l.b16 %v228
    %v311 = vunpack.c.h.b16 %v228
    %v312 = vunpack.c.l.b16 %v229
    %v313 = vunpack.c.h.b16 %v229
    %v314 = vunpack.c.l.b16 %v230
    %v315 = vunpack.c.h.b16 %v230
    %v316 = vunpack.c.l.b16 %v231
    %v317 = vunpack.c.h.b16 %v231
    %v318 = vunpack.c.l.b16 %v232
    %v319 = vunpack.c.h.b16 %v232
    %v320 = vunpack.c.l.b16 %v233
    %v321 = vunpack.c.h.b16 %v233
    %v322 = vunpack.c.l.b16 %v234
    %v323 = vunpack.c.h.b16 %v234
    %v324 = vunpack.c.l.b16 %v235
    %v325 = vunpack.c.h.b16 %v235
    %v326 = vunpack.c.l.b16 %v236
    %v327 = vunpack.c.h.b16 %v236
    %v328 = vunpack.c.l.b16 %v237
    %v329 = vunpack.c.h.b16 %v237
    %v330 = vunpack.c.l.b16 %v238
    %v331 = vunpack.c.h.b16 %v238
    %v332 = vunpack.c.l.b16 %v239
    %v333 = vunpack.c.h.b16 %v239
    %v334 = vunpack.c.l.b16 %v240
    %v335 = vunpack.c.h.b16 %v240
    %v336 = vunpack.c.l.b16 %v241
    %v337 = vunpack.c.h.b16 %v241
    %v338 = vunpack.c.l.b16 %v242
    %v339 = vunpack.c.h.b16 %v242
    %v340 = vunpack.c.l.b16 %v243
    %v341 = vunpack.c.h.b16 %v243
    %v342 = vunpack.c.l.b16 %v244
    %v343 = vunpack.c.h.b16 %v244
    %v344 = vunpack.c.l.b16 %v245
    %v345 = vunpack.c.h.b16 %v245
    %v346 = vunpack.c.l.b16 %v246
    %v347 = vunpack.c.h.b16 %v246
    %v348 = vunpack.c.l.b16 %v247
    %v349 = vunpack.c.h.b16 %v247
    %v350 = vunpack.c.l.b16 %v248
    %v351 = vunpack.c.h.b16 %v248
    %v352 = vunpack.c.l.b16 %v249
    %v353 = vunpack.c.h.b16 %v249
    %v354 = vunpack.c.l.b16 %v250
    %v355 = vunpack.c.h.b16 %v250
    %v356 = vunpack.c.l.b16 %v251
    %v357 = vunpack.c.h.b16 %v251
    %v358 = vunpack.c.l.b16 %v252
    %v359 = vunpack.c.h.b16 %v252
    %v360 = vunpack.c.l.b16 %v253
    %v361 = vunpack.c.h.b16 %v253
    %v362 = vpack.c.b16 %v300, %v298
    %v363 = vpack.c.b16 %v301, %v299
    %v364 = vpack.c.b16 %v304, %v302
    %v365 = vpack.c.b16 %v305, %v303
    %v366 = vpack.c.b16 %v308, %v306
    %v367 = vpack.c.b16 %v309, %v307
    %v368 = vpack.c.b16 %v312, %v310
    %v369 = vpack.c.b16 %v313, %v311
    %v370 = vpack.c.b16 %v316, %v314
    %v371 = vpack.c.b16 %v317, %v315
    %v372 = vpack.c.b16 %v320, %v318
    %v373 = vpack.c.b16 %v321, %v319
    %v374 = vpack.c.b16 %v324, %v322
    %v375 = vpack.c.b16 %v325, %v323
    %v376 = vpack.c.b16 %v328, %v326
    %v377 = vpack.c.b16 %v329, %v327
    %v378 = vpack.c.b16 %v332, %v330
    %v379 = vpack.c.b16 %v333, %v331
    %v380 = vpack.c.b16 %v336, %v334
    %v381 = vpack.c.b16 %v337, %v335
    %v382 = vpack.c.b16 %v340, %v338
    %v383 = vpack.c.b16 %v341, %v339
    %v384 = vpack.c.b16 %v344, %v342
    %v385 = vpack.c.b16 %v345, %v343
    %v386 = vpack.c.b16 %v348, %v346
    %v387 = vpack.c.b16 %v349, %v347
    %v388 = vpack.c.b16 %v352, %v350
    %v389 = vpack.c.b16 %v353, %v351
    %v390 = vpack.c.b16 %v356, %v354
    %v391 = vpack.c.b16 %v357, %v355
    %v392 = vpack.c.b16 %v360, %v358
    %v393 = vpack.c.b16 %v361, %v359
    %426 = vmatprep.subr.bf16.mxu0 %v377
    %427 = vmatpush1.bf16.msra.mxu0 %v376
    %428 = vmatprep.subr.bf16.mxu0 %v375
    %429 = vmatpush1.bf16.msra.mxu0 %v374
    %430 = vmatprep.subr.bf16.mxu0 %v373
    %431 = vmatpush1.bf16.msra.mxu0 %v372
    %432 = vmatprep.subr.bf16.mxu0 %v371
    %433 = vmatpush1.bf16.msra.mxu0 %v370
    %434 = vmatprep.subr.bf16.mxu0 %v369
    %435 = vmatpush1.bf16.msra.mxu0 %v368
    %436 = vmatprep.subr.bf16.mxu0 %v367
    %437 = vmatpush1.bf16.msra.mxu0 %v366
    %438 = vmatprep.subr.bf16.mxu0 %v365
    %439 = vmatpush1.bf16.msra.mxu0 %v364
    %440 = vmatprep.subr.bf16.mxu0 %v363
    %441 = vmatpush1.bf16.msra.mxu0 %v362
    %442 = vmatprep.subr.bf16.mxu0 %v393
    %443 = vmatpush2.bf16.msra.mxu0 %v392
    %444 = vmatprep.subr.bf16.mxu0 %v391
    %445 = vmatpush2.bf16.msra.mxu0 %v390
    %446 = vmatprep.subr.bf16.mxu0 %v389
    %447 = vmatpush2.bf16.msra.mxu0 %v388
    %448 = vmatprep.subr.bf16.mxu0 %v387
    %449 = vmatpush2.bf16.msra.mxu0 %v386
    %450 = vmatprep.subr.bf16.mxu0 %v385
    %451 = vmatpush2.bf16.msra.mxu0 %v384
    %452 = vmatprep.subr.bf16.mxu0 %v383
    %453 = vmatpush2.bf16.msra.mxu0 %v382
    %454 = vmatprep.subr.bf16.mxu0 %v381
    %455 = vmatpush2.bf16.msra.mxu0 %v380
    %456 = vmatprep.subr.bf16.mxu0 %v379
    %457 = vmatpush2.bf16.msra.mxu0 %v378
    %458 = vmatprep.mubr.bf16.mxu0 %v221
    %459 = vmatmul.mubr.bf16.gmra.mxu0 %v220
    %v460 = vpop.f32.mrf.mxu0
    %v461 = vadd.f32 %v259, %v460
    %v462 = vpop.f32.mrf.mxu0
    %v463 = vadd.f32 %v263, %v462
    %v464 = vpop.f32.mrf.mxu0
    %v465 = vpop.f32.mrf.mxu0
    %466 = vdwg.mxu0
    %v467 = vmax.f32 %v461, 0.0
    %v468 = vmax.f32 %v463, 0.0
    %v469 = vpack.c.bf16 %v467, %v467
    %v470 = vpack.c.bf16 %v468, %v468
    %v471 = vld [vmem:[#allocation6] sm:$0xf]
    %v472 = vld [vmem:[#allocation6 + $0x4] sm:$0xf]
    %v473 = vld [vmem:[#allocation6 + $0x8] sm:$0xf]
    %v474 = vld [vmem:[#allocation6 + $0xc] sm:$0xf]
    %v475 = vld [vmem:[#allocation6 + $0x10] sm:$0xf]
    %v476 = vld [vmem:[#allocation6 + $0x14] sm:$0xf]
    %v477 = vld [vmem:[#allocation6 + $0x18] sm:$0xf]
    %v478 = vld [vmem:[#allocation6 + $0x1c] sm:$0xf]
    %v479 = vld [vmem:[#allocation6 + $0x20] sm:$0xf]
    %v480 = vld [vmem:[#allocation6 + $0x24] sm:$0xf]
    %v481 = vld [vmem:[#allocation6 + $0x28] sm:$0xf]
    %v482 = vld [vmem:[#allocation6 + $0x2c] sm:$0xf]
    %v483 = vld [vmem:[#allocation6 + $0x30] sm:$0xf]
    %v484 = vld [vmem:[#allocation6 + $0x34] sm:$0xf]
    %v485 = vld [vmem:[#allocation6 + $0x38] sm:$0xf]
    %v486 = vld [vmem:[#allocation6 + $0x3c] sm:$0xf]
    %v487 = vld [vmem:[#allocation6 + $0x40] sm:$0xf]
    %v488 = vld [vmem:[#allocation6 + $0x44] sm:$0xf]
    %v489 = vld [vmem:[#allocation6 + $0x48] sm:$0xf]
    %v490 = vld [vmem:[#allocation6 + $0x4c] sm:$0xf]
    %v491 = vld [vmem:[#allocation6 + $0x50] sm:$0xf]
    %v492 = vld [vmem:[#allocation6 + $0x54] sm:$0xf]
    %v493 = vld [vmem:[#allocation6 + $0x58] sm:$0xf]
    %v494 = vld [vmem:[#allocation6 + $0x5c] sm:$0xf]
    %v495 = vld [vmem:[#allocation6 + $0x60] sm:$0xf]
    %v496 = vld [vmem:[#allocation6 + $0x64] sm:$0xf]
    %v497 = vld [vmem:[#allocation6 + $0x68] sm:$0xf]
    %v498 = vld [vmem:[#allocation6 + $0x6c] sm:$0xf]
    %v499 = vld [vmem:[#allocation6 + $0x70] sm:$0xf]
    %v500 = vld [vmem:[#allocation6 + $0x74] sm:$0xf]
    %v501 = vld [vmem:[#allocation6 + $0x78] sm:$0xf]
    %v502 = vld [vmem:[#allocation6 + $0x7c] sm:$0xf]
    %v503 = vld [vmem:[%s6] sm:$0x1]
    %v505 = vlaneseq
    %v506 = vshrl.u32 %v505, 7
    %v507 = vsub.s32 0, %v506
    %v508 = vrot.slane %v503, %v507
    %v542 = vunpack.c.l.b16 %v471
    %v543 = vunpack.c.l.b16 %v472
    %v544 = vunpack.c.l.b16 %v473
    %v545 = vunpack.c.l.b16 %v474
    %v546 = vunpack.c.l.b16 %v475
    %v547 = vunpack.c.l.b16 %v476
    %v548 = vunpack.c.l.b16 %v477
    %v549 = vunpack.c.l.b16 %v478
    %v550 = vunpack.c.l.b16 %v479
    %v551 = vunpack.c.l.b16 %v480
    %v552 = vunpack.c.l.b16 %v481
    %v553 = vunpack.c.l.b16 %v482
    %v554 = vunpack.c.l.b16 %v483
    %v555 = vunpack.c.l.b16 %v484
    %v556 = vunpack.c.l.b16 %v485
    %v557 = vunpack.c.l.b16 %v486
    %v558 = vunpack.c.l.b16 %v487
    %v559 = vunpack.c.l.b16 %v488
    %v560 = vunpack.c.l.b16 %v489
    %v561 = vunpack.c.l.b16 %v490
    %v562 = vunpack.c.l.b16 %v491
    %v563 = vunpack.c.l.b16 %v492
    %v564 = vunpack.c.l.b16 %v493
    %v565 = vunpack.c.l.b16 %v494
    %v566 = vunpack.c.l.b16 %v495
    %v567 = vunpack.c.l.b16 %v496
    %v568 = vunpack.c.l.b16 %v497
    %v569 = vunpack.c.l.b16 %v498
    %v570 = vunpack.c.l.b16 %v499
    %v571 = vunpack.c.l.b16 %v500
    %v572 = vunpack.c.l.b16 %v501
    %v573 = vunpack.c.l.b16 %v502
    %v574 = vpack.c.b16 %v543, %v542
    %v575 = vpack.c.b16 %v545, %v544
    %v576 = vpack.c.b16 %v547, %v546
    %v577 = vpack.c.b16 %v549, %v548
    %v578 = vpack.c.b16 %v551, %v550
    %v579 = vpack.c.b16 %v553, %v552
    %v580 = vpack.c.b16 %v555, %v554
    %v581 = vpack.c.b16 %v557, %v556
    %v582 = vpack.c.b16 %v559, %v558
    %v583 = vpack.c.b16 %v561, %v560
    %v584 = vpack.c.b16 %v563, %v562
    %v585 = vpack.c.b16 %v565, %v564
    %v586 = vpack.c.b16 %v567, %v566
    %v587 = vpack.c.b16 %v569, %v568
    %v588 = vpack.c.b16 %v571, %v570
    %v589 = vpack.c.b16 %v573, %v572
    %606 = vmatprep.subr.bf16.mxu0 0
    %607 = vmatpush1.bf16.msra.mxu0 %v581
    %608 = vmatprep.subr.bf16.mxu0 0
    %609 = vmatpush1.bf16.msra.mxu0 %v580
    %610 = vmatprep.subr.bf16.mxu0 0
    %611 = vmatpush1.bf16.msra.mxu0 %v579
    %612 = vmatprep.subr.bf16.mxu0 0
    %613 = vmatpush1.bf16.msra.mxu0 %v578
    %614 = vmatprep.subr.bf16.mxu0 0
    %615 = vmatpush1.bf16.msra.mxu0 %v577
    %616 = vmatprep.subr.bf16.mxu0 0
    %617 = vmatpush1.bf16.msra.mxu0 %v576
    %618 = vmatprep.subr.bf16.mxu0 0
    %619 = vmatpush1.bf16.msra.mxu0 %v575
    %620 = vmatprep.subr.bf16.mxu0 0
    %621 = vmatpush1.bf16.msra.mxu0 %v574
    %622 = vmatprep.subr.bf16.mxu0 0
    %623 = vmatpush2.bf16.msra.mxu0 %v589
    %624 = vmatprep.subr.bf16.mxu0 0
    %625 = vmatpush2.bf16.msra.mxu0 %v588
    %626 = vmatprep.subr.bf16.mxu0 0
    %627 = vmatpush2.bf16.msra.mxu0 %v587
    %628 = vmatprep.subr.bf16.mxu0 0
    %629 = vmatpush2.bf16.msra.mxu0 %v586
    %630 = vmatprep.subr.bf16.mxu0 0
    %631 = vmatpush2.bf16.msra.mxu0 %v585
    %632 = vmatprep.subr.bf16.mxu0 0
    %633 = vmatpush2.bf16.msra.mxu0 %v584
    %634 = vmatprep.subr.bf16.mxu0 0
    %635 = vmatpush2.bf16.msra.mxu0 %v583
    %636 = vmatprep.subr.bf16.mxu0 0
    %637 = vmatpush2.bf16.msra.mxu0 %v582
    %638 = vmatprep.mubr.bf16.mxu0 %v470
    %639 = vmatmul.mubr.bf16.gmra.mxu0 %v469
    %v640 = vpop.f32.mrf.mxu0
    %v641 = vadd.f32 %v508, %v640
    %v642 = vpop.f32.mrf.mxu0
    %v643 = vpop.f32.mrf.mxu0
    %v644 = vpop.f32.mrf.mxu0
    %645 = vdwg.mxu0
    %v646 = vpack.c.bf16 %v641, %v641
    %647 = vst [vmem:[%s7] sm:$0xf] %v646
    // Predicated region
    $region42: #{_forward_jit.1} parent=1 // pred_check
      _
    $region43: #{_forward_jit.1} parent=1 // pred_check_branch
      %649 = sbr.rel (0) target = $region45
    $region44: #{_forward_jit.1} parent=1 // pred_region
      _
    $region45: #{_forward_jit.1} parent=1 // pred_fallthru
      _
    // Predicated region
    $region46: #{_forward_jit.1} parent=1 // pred_check
      _
    $region47: #{_forward_jit.1} parent=1 // pred_check_branch
      %651 = sbr.rel (0) target = $region49
    $region48: #{_forward_jit.1} parent=1 // pred_region
      _
    $region49: #{_forward_jit.1} parent=1 // pred_fallthru
      _
    %652 = vsyncpa [#allocation3], 1
    %653 = vsyncpa [#allocation5], 1

</llo_original>
